<compile_context>
chip_gen: v7x
topology: tpu7x:2x2x1
jax: 0.10.0
libtpu: 0.0.40
codegen_flags: <defaults>
</compile_context>

<pallas_src>
import functools

import jax
import jax.numpy as jnp
from jax.experimental import pallas as pl
from jax.experimental.pallas import tpu as pltpu


def _neuro_fuzzy_kernel(
    x_ref,               # (12, tb)   compute dtype
    w1_ref, b1_ref,      # (32, 12)   / (32, 1)
    w2_ref, b2_ref,      # (32, 32)   / (32, 1)
    w3_ref, b3_ref,      # (16, 32)   / (16, 1)
    wh_ref, bh_ref,      # fused heads: (2, 16) / (2, 1)   (row 0 = speed, row 1 = yaw)
    out_ref,             # (2, tb) f32 -- lane-dense store
):
    cdt = w1_ref.dtype   # matmul-input dtype (bf16 or f32); accumulation is always f32

    # common = Linear(12,32) -> ReLU -> Linear(32,32) -> ReLU -> Linear(32,16) -> ReLU
    # computed transposed: h = W^T @ x, batch on the lane axis.
    h = jnp.dot(w1_ref[...], x_ref[...], preferred_element_type=jnp.float32) + b1_ref[...]
    h = jnp.maximum(h, 0.0).astype(cdt)

    h = jnp.dot(w2_ref[...], h, preferred_element_type=jnp.float32) + b2_ref[...]
    h = jnp.maximum(h, 0.0).astype(cdt)

    h = jnp.dot(w3_ref[...], h, preferred_element_type=jnp.float32) + b3_ref[...]
    h = jnp.maximum(h, 0.0).astype(cdt)

    # fused heads: single (2,16) @ (16,tb) matmul -> one lane-dense output store
    out_ref[...] = (
        jnp.dot(wh_ref[...], h, preferred_element_type=jnp.float32) + bh_ref[...]
    )


def _rep_map(i):     # grid-invariant operands (weights / biases) -> fetched once
    return (0, 0)


def _batch_map(i):   # batch-tiled operands (x^T, output) -> batch is the last (lane) axis
    return (0, i)


def _round_up(x, m):
    return ((x + m - 1) // m) * m


@functools.partial(jax.jit, static_argnames=("tile_b", "use_bf16"))
def neuro_fuzzy_forward(x, params, *, tile_b=8192, use_bf16=True):
    """x: (B, 12) float32. Returns (speed, yaw_rate), each (B, 1) float32.

    Weights in `params` are stored as (in, out); the wrapper transposes them once
    so the kernel computes W^T @ x^T + b^T (same math as PyTorch's Linear).
    Note: with use_bf16=True the inputs themselves are cast to bf16 (~3 significant
    digits), hence the looser tolerance in the bf16 test below.
    """
    B, F = x.shape
    assert F == 12

    compute_dtype = jnp.bfloat16 if use_bf16 else jnp.float32
    # TODO(synk): on v5e (no bf16 VPU) measuring f32 activations (cast only x and
    # weights) vs. bf16 may shave a few %; not tuned per-chip here.

    # Fuse the two heads: (2, 16) weight rows = [speed; yaw], (2, 1) bias.
    whT = jnp.concatenate([params["ws"], params["wy"]], axis=1).T   # (2, 16)
    bhT = jnp.concatenate([params["bs"], params["by"]], axis=1).T   # (2, 1)

    # Matmul inputs in compute dtype; biases stay f32 (f32 VALU adds everywhere).
    xT = x.T.astype(compute_dtype)                 # (12, B)
    w1 = params["w1"].T.astype(compute_dtype)      # (32, 12)
    w2 = params["w2"].T.astype(compute_dtype)      # (32, 32)
    w3 = params["w3"].T.astype(compute_dtype)      # (16, 32)
    wh = whT.astype(compute_dtype)                 # (2, 16)
    b1 = params["b1"].T.astype(jnp.float32)        # (32, 1)
    b2 = params["b2"].T.astype(jnp.float32)        # (32, 1)
    b3 = params["b3"].T.astype(jnp.float32)        # (16, 1)
    bh = bhT.astype(jnp.float32)                   # (2, 1)

    # Batch tile: multiple of 128 (lane axis), derived from B to minimize padding
    # waste, with >= 2 grid steps whenever the batch allows it so the "parallel"
    # axis shards across v7x's two TensorCores.
    b_pad_min = _round_up(B, 128)
    tb_cap = max(128, (int(tile_b) // 128) * 128)
    n_steps = pl.cdiv(b_pad_min, tb_cap)
    if b_pad_min >= 256:
        n_steps = max(n_steps, 2)
    tb = _round_up(pl.cdiv(b_pad_min, n_steps), 128)
    b_pad = n_steps * tb

    if b_pad != B:
        xT = jnp.pad(xT, ((0, 0), (0, b_pad - B)))
    grid = (n_steps,)

    in_specs = [
        pl.BlockSpec((12, tb), _batch_map),        # x^T: streamed / pipelined over batch
        pl.BlockSpec(w1.shape, _rep_map),
        pl.BlockSpec(b1.shape, _rep_map),
        pl.BlockSpec(w2.shape, _rep_map),
        pl.BlockSpec(b2.shape, _rep_map),
        pl.BlockSpec(w3.shape, _rep_map),
        pl.BlockSpec(b3.shape, _rep_map),
        pl.BlockSpec(wh.shape, _rep_map),
        pl.BlockSpec(bh.shape, _rep_map),
    ]
    out_specs = pl.BlockSpec((2, tb), _batch_map)  # lane-dense output block

    in_bytes = 2 if use_bf16 else 4
    cost = pl.CostEstimate(
        flops=2 * b_pad * (12 * 32 + 32 * 32 + 32 * 16 + 16 * 2),
        transcendentals=0,
        bytes_accessed=b_pad * (12 * in_bytes + 2 * 4)
        + (12 * 32 + 32 * 32 + 32 * 16 + 16 * 2) * in_bytes
        + (32 + 32 + 16 + 2) * 4,
    )

    out = pl.pallas_call(
        _neuro_fuzzy_kernel,
        out_shape=jax.ShapeDtypeStruct((2, b_pad), jnp.float32),
        grid=grid,
        in_specs=in_specs,
        out_specs=out_specs,
        compiler_params=pltpu.CompilerParams(
            dimension_semantics=("parallel",),
        ),
        cost_estimate=cost,
    )(xT, w1, b1, w2, b2, w3, b3, wh, bh)

    out = out[:, :B]                 # drop padded batch columns (bias-driven garbage)
    speed = out[0:1, :].T            # (B, 1)
    yaw_rate = out[1:2, :].T         # (B, 1)
    return speed, yaw_rate


def init_params(key):
    """Deterministic init matching PyTorch nn.Linear default
    (U(-1/sqrt(fan_in), +1/sqrt(fan_in))). Weights stored as (in, out)."""
    dims = [
        ("w1", "b1", 12, 32),
        ("w2", "b2", 32, 32),
        ("w3", "b3", 32, 16),
        ("ws", "bs", 16, 1),
        ("wy", "by", 16, 1),
    ]
    params = {}
    for wname, bname, fan_in, fan_out in dims:
        key, kw, kb = jax.random.split(key, 3)
        bound = 1.0 / (fan_in ** 0.5)
        params[wname] = jax.random.uniform(
            kw, (fan_in, fan_out), jnp.float32, minval=-bound, maxval=bound
        )
        params[bname] = jax.random.uniform(
            kb, (1, fan_out), jnp.float32, minval=-bound, maxval=bound
        )
    return params


def reference_forward(x, p):
    h = jnp.maximum(x @ p["w1"] + p["b1"], 0.0)
    h = jnp.maximum(h @ p["w2"] + p["b2"], 0.0)
    h = jnp.maximum(h @ p["w3"] + p["b3"], 0.0)
    return h @ p["ws"] + p["bs"], h @ p["wy"] + p["by"]


if __name__ == "__main__":
    key = jax.random.PRNGKey(0)
    key, kx1, kx2 = jax.random.split(key, 3)
    params = init_params(key)

    # Case 1: tiny batch, f32 path -> exact match against the reference.
    B1 = 8
    x1 = jax.random.normal(kx1, (B1, 12), dtype=jnp.float32)
    s1, y1 = neuro_fuzzy_forward(x1, params, use_bf16=False)
    s1, y1 = jax.block_until_ready(s1), jax.block_until_ready(y1)
    rs1, ry1 = reference_forward(x1, params)
    assert s1.shape == (B1, 1) and y1.shape == (B1, 1)
    assert jnp.allclose(s1, rs1, atol=1e-5, rtol=1e-5)
    assert jnp.allclose(y1, ry1, atol=1e-5, rtol=1e-5)

    # Case 2: non-multiple-of-128 batch, bf16 matmuls (f32 accumulation),
    # tile_b=128 so the batch grid has multiple steps (exercises pipelining,
    # the >=2-step v7x rule, and batch padding).
    B2 = 300
    x2 = jax.random.normal(kx2, (B2, 12), dtype=jnp.float32)
    s2, y2 = neuro_fuzzy_forward(x2, params, tile_b=128, use_bf16=True)
    s2, y2 = jax.block_until_ready(s2), jax.block_until_ready(y2)
    rs2, ry2 = reference_forward(x2, params)
    assert s2.shape == (B2, 1) and y2.shape == (B2, 1)
    assert jnp.allclose(s2, rs2, atol=2e-2, rtol=2e-2)
    assert jnp.allclose(y2, ry2, atol=2e-2, rtol=2e-2)

    print("KERNEL_OK")
</pallas_src>

<mosaic_0001>
module attributes {stable_mosaic.version = 11 : i64} {
  func.func @_neuro_fuzzy_kernel(%arg0: i32, %arg1: memref<12x128xf32, #tpu.memory_space<vmem>>, %arg2: memref<32x12xf32, #tpu.memory_space<vmem>>, %arg3: memref<32x1xf32, #tpu.memory_space<vmem>>, %arg4: memref<32x32xf32, #tpu.memory_space<vmem>>, %arg5: memref<32x1xf32, #tpu.memory_space<vmem>>, %arg6: memref<16x32xf32, #tpu.memory_space<vmem>>, %arg7: memref<16x1xf32, #tpu.memory_space<vmem>>, %arg8: memref<2x16xf32, #tpu.memory_space<vmem>>, %arg9: memref<2x1xf32, #tpu.memory_space<vmem>>, %arg10: memref<2x128xf32, #tpu.memory_space<vmem>>) attributes {dimension_semantics = [#tpu.dimension_semantics<parallel>], iteration_bounds = array<i64: 1>, scalar_prefetch = 0 : i64, scratch_operands = 0 : i64, tpu.core_type = #tpu.core_type<tc>, window_params = [{transform_indices = @transform_0, window_bounds = array<i64: 12, 128>}, {pipeline_mode = #tpu.pipeline_mode<synchronous>, transform_indices = @transform_1, window_bounds = array<i64: 32, 12>}, {pipeline_mode = #tpu.pipeline_mode<synchronous>, transform_indices = @transform_2, window_bounds = array<i64: 32, 1>}, {pipeline_mode = #tpu.pipeline_mode<synchronous>, transform_indices = @transform_3, window_bounds = array<i64: 32, 32>}, {pipeline_mode = #tpu.pipeline_mode<synchronous>, transform_indices = @transform_4, window_bounds = array<i64: 32, 1>}, {pipeline_mode = #tpu.pipeline_mode<synchronous>, transform_indices = @transform_5, window_bounds = array<i64: 16, 32>}, {pipeline_mode = #tpu.pipeline_mode<synchronous>, transform_indices = @transform_6, window_bounds = array<i64: 16, 1>}, {pipeline_mode = #tpu.pipeline_mode<synchronous>, transform_indices = @transform_7, window_bounds = array<i64: 2, 16>}, {pipeline_mode = #tpu.pipeline_mode<synchronous>, transform_indices = @transform_8, window_bounds = array<i64: 2, 1>}, {transform_indices = @transform_9, window_bounds = array<i64: 2, 128>}]} {
    %c0 = arith.constant 0 : index
    %c0_0 = arith.constant 0 : index
    %0 = vector.load %arg2[%c0, %c0_0] : memref<32x12xf32, #tpu.memory_space<vmem>>, vector<32x12xf32>
    %c0_1 = arith.constant 0 : index
    %c0_2 = arith.constant 0 : index
    %1 = vector.load %arg1[%c0_1, %c0_2] : memref<12x128xf32, #tpu.memory_space<vmem>>, vector<12x128xf32>
    %cst = arith.constant dense<0.000000e+00> : vector<32x128xf32>
    %2 = tpu.matmul %0, %1, %cst {dimension_numbers = #tpu.dot_dimension_numbers<[1], [0], [0], [1], [0, 0, 1, 1], [], []>} : vector<32x12xf32>, vector<12x128xf32>, vector<32x128xf32> -> vector<32x128xf32>
    %c0_3 = arith.constant 0 : index
    %c0_4 = arith.constant 0 : index
    %3 = vector.load %arg3[%c0_3, %c0_4] : memref<32x1xf32, #tpu.memory_space<vmem>>, vector<32x1xf32>
    %4 = vector.broadcast %3 : vector<32x1xf32> to vector<32x128xf32>
    %5 = arith.addf %2, %4 : vector<32x128xf32>
    %cst_5 = arith.constant 0.000000e+00 : f32
    %6 = vector.broadcast %cst_5 : f32 to vector<32x128xf32>
    %7 = arith.maximumf %5, %6 : vector<32x128xf32>
    %c0_6 = arith.constant 0 : index
    %c0_7 = arith.constant 0 : index
    %8 = vector.load %arg4[%c0_6, %c0_7] : memref<32x32xf32, #tpu.memory_space<vmem>>, vector<32x32xf32>
    %cst_8 = arith.constant dense<0.000000e+00> : vector<32x128xf32>
    %9 = tpu.matmul %8, %7, %cst_8 {dimension_numbers = #tpu.dot_dimension_numbers<[1], [0], [0], [1], [0, 0, 1, 1], [], []>} : vector<32x32xf32>, vector<32x128xf32>, vector<32x128xf32> -> vector<32x128xf32>
    %c0_9 = arith.constant 0 : index
    %c0_10 = arith.constant 0 : index
    %10 = vector.load %arg5[%c0_9, %c0_10] : memref<32x1xf32, #tpu.memory_space<vmem>>, vector<32x1xf32>
    %11 = vector.broadcast %10 : vector<32x1xf32> to vector<32x128xf32>
    %12 = arith.addf %9, %11 : vector<32x128xf32>
    %cst_11 = arith.constant 0.000000e+00 : f32
    %13 = vector.broadcast %cst_11 : f32 to vector<32x128xf32>
    %14 = arith.maximumf %12, %13 : vector<32x128xf32>
    %c0_12 = arith.constant 0 : index
    %c0_13 = arith.constant 0 : index
    %15 = vector.load %arg6[%c0_12, %c0_13] : memref<16x32xf32, #tpu.memory_space<vmem>>, vector<16x32xf32>
    %cst_14 = arith.constant dense<0.000000e+00> : vector<16x128xf32>
    %16 = tpu.matmul %15, %14, %cst_14 {dimension_numbers = #tpu.dot_dimension_numbers<[1], [0], [0], [1], [0, 0, 1, 1], [], []>} : vector<16x32xf32>, vector<32x128xf32>, vector<16x128xf32> -> vector<16x128xf32>
    %c0_15 = arith.constant 0 : index
    %c0_16 = arith.constant 0 : index
    %17 = vector.load %arg7[%c0_15, %c0_16] : memref<16x1xf32, #tpu.memory_space<vmem>>, vector<16x1xf32>
    %18 = vector.broadcast %17 : vector<16x1xf32> to vector<16x128xf32>
    %19 = arith.addf %16, %18 : vector<16x128xf32>
    %cst_17 = arith.constant 0.000000e+00 : f32
    %20 = vector.broadcast %cst_17 : f32 to vector<16x128xf32>
    %21 = arith.maximumf %19, %20 : vector<16x128xf32>
    %c0_18 = arith.constant 0 : index
    %c0_19 = arith.constant 0 : index
    %22 = vector.load %arg8[%c0_18, %c0_19] : memref<2x16xf32, #tpu.memory_space<vmem>>, vector<2x16xf32>
    %cst_20 = arith.constant dense<0.000000e+00> : vector<2x128xf32>
    %23 = tpu.matmul %22, %21, %cst_20 {dimension_numbers = #tpu.dot_dimension_numbers<[1], [0], [0], [1], [0, 0, 1, 1], [], []>} : vector<2x16xf32>, vector<16x128xf32>, vector<2x128xf32> -> vector<2x128xf32>
    %c0_21 = arith.constant 0 : index
    %c0_22 = arith.constant 0 : index
    %24 = vector.load %arg9[%c0_21, %c0_22] : memref<2x1xf32, #tpu.memory_space<vmem>>, vector<2x1xf32>
    %25 = vector.broadcast %24 : vector<2x1xf32> to vector<2x128xf32>
    %26 = arith.addf %23, %25 : vector<2x128xf32>
    %c0_23 = arith.constant 0 : index
    %c0_24 = arith.constant 0 : index
    %27 = vector.load %arg10[%c0_23, %c0_24] : memref<2x128xf32, #tpu.memory_space<vmem>>, vector<2x128xf32>
    tpu.vector_store %arg10[%c0_23, %c0_24], %26 {strides = array<i32>} : memref<2x128xf32, #tpu.memory_space<vmem>>, vector<2x128xf32>,
    return
  }
  func.func @transform_0(%arg0: i32) -> (i32, i32) {
    %c0_i32 = arith.constant 0 : i32
    %c0_i32_0 = arith.constant 0 : i32
    return %c0_i32, %arg0 : i32, i32
  }
  func.func @transform_1(%arg0: i32) -> (i32, i32) {
    %c0_i32 = arith.constant 0 : i32
    %c0_i32_0 = arith.constant 0 : i32
    %c0_i32_1 = arith.constant 0 : i32
    return %c0_i32, %c0_i32_0 : i32, i32
  }
  func.func @transform_2(%arg0: i32) -> (i32, i32) {
    %c0_i32 = arith.constant 0 : i32
    %c0_i32_0 = arith.constant 0 : i32
    %c0_i32_1 = arith.constant 0 : i32
    return %c0_i32, %c0_i32_0 : i32, i32
  }
  func.func @transform_3(%arg0: i32) -> (i32, i32) {
    %c0_i32 = arith.constant 0 : i32
    %c0_i32_0 = arith.constant 0 : i32
    %c0_i32_1 = arith.constant 0 : i32
    return %c0_i32, %c0_i32_0 : i32, i32
  }
  func.func @transform_4(%arg0: i32) -> (i32, i32) {
    %c0_i32 = arith.constant 0 : i32
    %c0_i32_0 = arith.constant 0 : i32
    %c0_i32_1 = arith.constant 0 : i32
    return %c0_i32, %c0_i32_0 : i32, i32
  }
  func.func @transform_5(%arg0: i32) -> (i32, i32) {
    %c0_i32 = arith.constant 0 : i32
    %c0_i32_0 = arith.constant 0 : i32
    %c0_i32_1 = arith.constant 0 : i32
    return %c0_i32, %c0_i32_0 : i32, i32
  }
  func.func @transform_6(%arg0: i32) -> (i32, i32) {
    %c0_i32 = arith.constant 0 : i32
    %c0_i32_0 = arith.constant 0 : i32
    %c0_i32_1 = arith.constant 0 : i32
    return %c0_i32, %c0_i32_0 : i32, i32
  }
  func.func @transform_7(%arg0: i32) -> (i32, i32) {
    %c0_i32 = arith.constant 0 : i32
    %c0_i32_0 = arith.constant 0 : i32
    %c0_i32_1 = arith.constant 0 : i32
    return %c0_i32, %c0_i32_0 : i32, i32
  }
  func.func @transform_8(%arg0: i32) -> (i32, i32) {
    %c0_i32 = arith.constant 0 : i32
    %c0_i32_0 = arith.constant 0 : i32
    %c0_i32_1 = arith.constant 0 : i32
    return %c0_i32, %c0_i32_0 : i32, i32
  }
  func.func @transform_9(%arg0: i32) -> (i32, i32) {
    %c0_i32 = arith.constant 0 : i32
    %c0_i32_0 = arith.constant 0 : i32
    return %c0_i32, %arg0 : i32, i32
  }
}

</mosaic_0001>

<llo_original>
// kernel: neuro_fuzzy_forward.1
$region0: #{neuro_fuzzy_forward.1}
  #allocation0 [shape = 'u32[]', space=smem, size = 0x4, offset = 0x4, fixed_abs, tag = 'smem constant byte address 0x4 - core index']
  #allocation1 [shape = 'u32[144,128]{1,0:T(1,128)}', space=vmem, size = 0x12000, scoped, tag = 'internal scratch']
  %s0 = inlined_call_operand.vmem [shape: f32[12,128], index: 0, kind: input, shape index: {}]
  %s1 = inlined_call_operand.vmem [shape: f32[32,12], index: 1, kind: input, shape index: {}]
  %s2 = inlined_call_operand.vmem [shape: f32[32,1], index: 2, kind: input, shape index: {}]
  %s3 = inlined_call_operand.vmem [shape: f32[32,32], index: 3, kind: input, shape index: {}]
  %s4 = inlined_call_operand.vmem [shape: f32[32,1], index: 4, kind: input, shape index: {}]
  %s5 = inlined_call_operand.vmem [shape: f32[16,32], index: 5, kind: input, shape index: {}]
  %s6 = inlined_call_operand.vmem [shape: f32[16,1], index: 6, kind: input, shape index: {}]
  %s7 = inlined_call_operand.vmem [shape: f32[2,16], index: 7, kind: input, shape index: {}]
  %s8 = inlined_call_operand.vmem [shape: f32[2,1], index: 8, kind: input, shape index: {}]
  %s9 = inlined_call_operand.vmem [shape: f32[2,128], index: 9, kind: output, shape index: {}]
  %s10 = sld [smem:[#allocation0]]
  $region46: #{neuro_fuzzy_forward.1} parent=0
    _
  %s12 = ssub.s32 1, %s10
  %s13 = scalar_select 0, %s12, %s10
  // Predicated region
  $region2: #{neuro_fuzzy_forward.1} parent=0 // pred_check
    _
  $region3: #{neuro_fuzzy_forward.1} parent=0 // pred_check_branch
    %15 = sbr.rel (0) target = $region5
  $region4: #{neuro_fuzzy_forward.1} parent=0 // pred_region
    _
  $region5: #{neuro_fuzzy_forward.1} parent=0 // pred_fallthru
    _
  // Predicated region
  $region6: #{neuro_fuzzy_forward.1} parent=0 // pred_check
    _
  $region7: #{neuro_fuzzy_forward.1} parent=0 // pred_check_branch
    %17 = sbr.rel (0) target = $region9
  $region8: #{neuro_fuzzy_forward.1} parent=0 // pred_region
    _
  $region9: #{neuro_fuzzy_forward.1} parent=0 // pred_fallthru
    _
  // Predicated region
  $region10: #{neuro_fuzzy_forward.1} parent=0 // pred_check
    _
  $region11: #{neuro_fuzzy_forward.1} parent=0 // pred_check_branch
    %19 = sbr.rel (0) target = $region13
  $region12: #{neuro_fuzzy_forward.1} parent=0 // pred_region
    _
  $region13: #{neuro_fuzzy_forward.1} parent=0 // pred_fallthru
    _
  // Predicated region
  $region14: #{neuro_fuzzy_forward.1} parent=0 // pred_check
    _
  $region15: #{neuro_fuzzy_forward.1} parent=0 // pred_check_branch
    %21 = sbr.rel (0) target = $region17
  $region16: #{neuro_fuzzy_forward.1} parent=0 // pred_region
    _
  $region17: #{neuro_fuzzy_forward.1} parent=0 // pred_fallthru
    _
  // Predicated region
  $region18: #{neuro_fuzzy_forward.1} parent=0 // pred_check
    _
  $region19: #{neuro_fuzzy_forward.1} parent=0 // pred_check_branch
    %23 = sbr.rel (0) target = $region21
  $region20: #{neuro_fuzzy_forward.1} parent=0 // pred_region
    _
  $region21: #{neuro_fuzzy_forward.1} parent=0 // pred_fallthru
    _
  // Predicated region
  $region22: #{neuro_fuzzy_forward.1} parent=0 // pred_check
    _
  $region23: #{neuro_fuzzy_forward.1} parent=0 // pred_check_branch
    %25 = sbr.rel (0) target = $region25
  $region24: #{neuro_fuzzy_forward.1} parent=0 // pred_region
    _
  $region25: #{neuro_fuzzy_forward.1} parent=0 // pred_fallthru
    _
  // Predicated region
  $region26: #{neuro_fuzzy_forward.1} parent=0 // pred_check
    _
  $region27: #{neuro_fuzzy_forward.1} parent=0 // pred_check_branch
    %27 = sbr.rel (0) target = $region29
  $region28: #{neuro_fuzzy_forward.1} parent=0 // pred_region
    _
  $region29: #{neuro_fuzzy_forward.1} parent=0 // pred_fallthru
    _
  // Predicated region
  $region30: #{neuro_fuzzy_forward.1} parent=0 // pred_check
    _
  $region31: #{neuro_fuzzy_forward.1} parent=0 // pred_check_branch
    %29 = sbr.rel (0) target = $region33
  $region32: #{neuro_fuzzy_forward.1} parent=0 // pred_region
    _
  $region33: #{neuro_fuzzy_forward.1} parent=0 // pred_fallthru
    _
  // Predicated region
  $region34: #{neuro_fuzzy_forward.1} parent=0 // pred_check
    _
  $region35: #{neuro_fuzzy_forward.1} parent=0 // pred_check_branch
    %31 = sbr.rel (0) target = $region37
  $region36: #{neuro_fuzzy_forward.1} parent=0 // pred_region
    _
  $region37: #{neuro_fuzzy_forward.1} parent=0 // pred_fallthru
    _
  %v32 = vld [vmem:[%s1] sm:$0xff]
  %v33 = vld [vmem:[%s1 + $0x8] sm:$0xff]
  %v34 = vld [vmem:[%s1 + $0x10] sm:$0xff]
  %v35 = vld [vmem:[%s1 + $0x18] sm:$0xff]
  %v36 = vld [vmem:[%s0] sm:$0xff]
  %v37 = vld [vmem:[%s0 + $0x8] sm:$0xf]
  %v38 = vld [vmem:[%s2] sm:$0xff]
  %v39 = vld [vmem:[%s2 + $0x8] sm:$0xff]
  %v40 = vld [vmem:[%s2 + $0x10] sm:$0xff]
  %v41 = vld [vmem:[%s2 + $0x18] sm:$0xff]
  %43 = vset.pattern.permute.xlu0 0
  %44 = vperm.xlu0 %43, %v38
  %v45 = vpop.permute.xlu0 %44
  %48 = vset.pattern.permute.xlu0 0
  %49 = vperm.xlu0 %48, %v39
  %v50 = vpop.permute.xlu0 %49
  %53 = vset.pattern.permute.xlu0 0
  %54 = vperm.xlu0 %53, %v40
  %v55 = vpop.permute.xlu0 %54
  %58 = vset.pattern.permute.xlu0 0
  %59 = vperm.xlu0 %58, %v41
  %v60 = vpop.permute.xlu0 %59
  %vm62 = vcmask 97280
  %v64 = vsel %vm62, %v32, 0
  %v67 = vsel %vm62, %v33, 0
  %v70 = vsel %vm62, %v34, 0
  %v73 = vsel %vm62, %v35, 0
  %vm75 = vcmask 1043456
  %v77 = vsel %vm75, %v37, 0
  %79 = vmatprep.subr.mxu0 0.0
  %80 = vmatpush1.msra.mxu0 %v36
  %81 = vmatprep.subr.mxu0 0.0
  %82 = vmatpush1.msra.mxu0 %v77
  %83 = vmatprep.subr.mxu0 0.0
  %84 = vmatpush1.msra.mxu0 0.0
  %85 = vmatprep.subr.mxu0 0.0
  %86 = vmatpush1.msra.mxu0 0.0
  %87 = vmatprep.subr.mxu0 0.0
  %88 = vmatpush1.msra.mxu0 0.0
  %89 = vmatprep.subr.mxu0 0.0
  %90 = vmatpush1.msra.mxu0 0.0
  %91 = vmatprep.subr.mxu0 0.0
  %92 = vmatpush1.msra.mxu0 0.0
  %93 = vmatprep.subr.mxu0 0.0
  %94 = vmatpush1.msra.mxu0 0.0
  %95 = vmatprep.subr.mxu0 0.0
  %96 = vmatpush1.msra.mxu0 0.0
  %97 = vmatprep.subr.mxu0 0.0
  %98 = vmatpush1.msra.mxu0 0.0
  %99 = vmatprep.subr.mxu0 0.0
  %100 = vmatpush1.msra.mxu0 0.0
  %101 = vmatprep.subr.mxu0 0.0
  %102 = vmatpush1.msra.mxu0 0.0
  %103 = vmatprep.subr.mxu0 0.0
  %104 = vmatpush1.msra.mxu0 0.0
  %105 = vmatprep.subr.mxu0 0.0
  %106 = vmatpush1.msra.mxu0 0.0
  %107 = vmatprep.subr.mxu0 0.0
  %108 = vmatpush1.msra.mxu0 0.0
  %109 = vmatprep.subr.mxu0 0.0
  %110 = vmatpush1.msra.mxu0 0.0
  %111 = vmatprep.subr.mxu0 0.0
  %112 = vmatpush1.msra.mxu0 0.0
  %113 = vmatprep.subr.mxu0 0.0
  %114 = vmatpush1.msra.mxu0 0.0
  %115 = vmatprep.subr.mxu0 0.0
  %116 = vmatpush1.msra.mxu0 0.0
  %117 = vmatprep.subr.mxu0 0.0
  %118 = vmatpush1.msra.mxu0 0.0
  %119 = vmatprep.subr.mxu0 0.0
  %120 = vmatpush1.msra.mxu0 0.0
  %121 = vmatprep.subr.mxu0 0.0
  %122 = vmatpush1.msra.mxu0 0.0
  %123 = vmatprep.subr.mxu0 0.0
  %124 = vmatpush1.msra.mxu0 0.0
  %125 = vmatprep.subr.mxu0 0.0
  %126 = vmatpush1.msra.mxu0 0.0
  %127 = vmatprep.subr.mxu0 0.0
  %128 = vmatpush1.msra.mxu0 0.0
  %129 = vmatprep.subr.mxu0 0.0
  %130 = vmatpush1.msra.mxu0 0.0
  %131 = vmatprep.subr.mxu0 0.0
  %132 = vmatpush1.msra.mxu0 0.0
  %133 = vmatprep.subr.mxu0 0.0
  %134 = vmatpush1.msra.mxu0 0.0
  %135 = vmatprep.subr.mxu0 0.0
  %136 = vmatpush1.msra.mxu0 0.0
  %137 = vmatprep.subr.mxu0 0.0
  %138 = vmatpush1.msra.mxu0 0.0
  %139 = vmatprep.subr.mxu0 0.0
  %140 = vmatpush1.msra.mxu0 0.0
  %141 = vmatprep.subr.mxu0 0.0
  %142 = vmatpush1.msra.mxu0 0.0
  %143 = vmatprep.mubr.f32.mxu0 0.0
  %144 = vmatmul.mubr.f32.gmra.mrb[0].mxu0 %v64
  %v145 = vpop.f32.mrb[0].mxu0
  %v146 = vadd.f32 %v45, %v145
  %v147 = vpop.f32.mrb[0].mxu0
  %148 = vmatprep.mubr.f32.mxu0 0.0
  %149 = vmatmul.mubr.f32.gmra.mrb[0].mxu0 %v67
  %v150 = vpop.f32.mrb[0].mxu0
  %v151 = vadd.f32 %v50, %v150
  %v152 = vpop.f32.mrb[0].mxu0
  %153 = vmatprep.mubr.f32.mxu0 0.0
  %154 = vmatmul.mubr.f32.gmra.mrb[0].mxu0 %v70
  %v155 = vpop.f32.mrb[0].mxu0
  %v156 = vadd.f32 %v55, %v155
  %v157 = vpop.f32.mrb[0].mxu0
  %158 = vmatprep.mubr.f32.mxu0 0.0
  %159 = vmatmul.mubr.f32.gmra.mrb[0].mxu0 %v73
  %v160 = vpop.f32.mrb[0].mxu0
  %v161 = vadd.f32 %v60, %v160
  %v162 = vpop.f32.mrb[0].mxu0
  %163 = vdwg.mxu0
  %v164 = vmax.f32 %v146, 0.0
  %v165 = vmax.f32 %v151, 0.0
  %v166 = vmax.f32 %v156, 0.0
  %v167 = vmax.f32 %v161, 0.0
  %v168 = vld [vmem:[%s3] sm:$0xff]
  %v169 = vld [vmem:[%s3 + $0x8] sm:$0xff]
  %v170 = vld [vmem:[%s3 + $0x10] sm:$0xff]
  %v171 = vld [vmem:[%s3 + $0x18] sm:$0xff]
  %v172 = vld [vmem:[%s4] sm:$0xff]
  %v173 = vld [vmem:[%s4 + $0x8] sm:$0xff]
  %v174 = vld [vmem:[%s4 + $0x10] sm:$0xff]
  %v175 = vld [vmem:[%s4 + $0x18] sm:$0xff]
  %177 = vset.pattern.permute.xlu0 0
  %178 = vperm.xlu0 %177, %v172
  %v179 = vpop.permute.xlu0 %178
  %182 = vset.pattern.permute.xlu0 0
  %183 = vperm.xlu0 %182, %v173
  %v184 = vpop.permute.xlu0 %183
  %187 = vset.pattern.permute.xlu0 0
  %188 = vperm.xlu0 %187, %v174
  %v189 = vpop.permute.xlu0 %188
  %192 = vset.pattern.permute.xlu0 0
  %193 = vperm.xlu0 %192, %v175
  %v194 = vpop.permute.xlu0 %193
  %vm196 = vcmask 261120
  %v198 = vsel %vm196, %v168, 0
  %v201 = vsel %vm196, %v169, 0
  %v204 = vsel %vm196, %v170, 0
  %v207 = vsel %vm196, %v171, 0
  %209 = vmatprep.subr.mxu0 0.0
  %210 = vmatpush1.msra.mxu0 %v164
  %211 = vmatprep.subr.mxu0 0.0
  %212 = vmatpush1.msra.mxu0 %v165
  %213 = vmatprep.subr.mxu0 0.0
  %214 = vmatpush1.msra.mxu0 %v166
  %215 = vmatprep.subr.mxu0 0.0
  %216 = vmatpush1.msra.mxu0 %v167
  %217 = vmatprep.subr.mxu0 0.0
  %218 = vmatpush1.msra.mxu0 0.0
  %219 = vmatprep.subr.mxu0 0.0
  %220 = vmatpush1.msra.mxu0 0.0
  %221 = vmatprep.subr.mxu0 0.0
  %222 = vmatpush1.msra.mxu0 0.0
  %223 = vmatprep.subr.mxu0 0.0
  %224 = vmatpush1.msra.mxu0 0.0
  %225 = vmatprep.subr.mxu0 0.0
  %226 = vmatpush1.msra.mxu0 0.0
  %227 = vmatprep.subr.mxu0 0.0
  %228 = vmatpush1.msra.mxu0 0.0
  %229 = vmatprep.subr.mxu0 0.0
  %230 = vmatpush1.msra.mxu0 0.0
  %231 = vmatprep.subr.mxu0 0.0
  %232 = vmatpush1.msra.mxu0 0.0
  %233 = vmatprep.subr.mxu0 0.0
  %234 = vmatpush1.msra.mxu0 0.0
  %235 = vmatprep.subr.mxu0 0.0
  %236 = vmatpush1.msra.mxu0 0.0
  %237 = vmatprep.subr.mxu0 0.0
  %238 = vmatpush1.msra.mxu0 0.0
  %239 = vmatprep.subr.mxu0 0.0
  %240 = vmatpush1.msra.mxu0 0.0
  %241 = vmatprep.subr.mxu0 0.0
  %242 = vmatpush1.msra.mxu0 0.0
  %243 = vmatprep.subr.mxu0 0.0
  %244 = vmatpush1.msra.mxu0 0.0
  %245 = vmatprep.subr.mxu0 0.0
  %246 = vmatpush1.msra.mxu0 0.0
  %247 = vmatprep.subr.mxu0 0.0
  %248 = vmatpush1.msra.mxu0 0.0
  %249 = vmatprep.subr.mxu0 0.0
  %250 = vmatpush1.msra.mxu0 0.0
  %251 = vmatprep.subr.mxu0 0.0
  %252 = vmatpush1.msra.mxu0 0.0
  %253 = vmatprep.subr.mxu0 0.0
  %254 = vmatpush1.msra.mxu0 0.0
  %255 = vmatprep.subr.mxu0 0.0
  %256 = vmatpush1.msra.mxu0 0.0
  %257 = vmatprep.subr.mxu0 0.0
  %258 = vmatpush1.msra.mxu0 0.0
  %259 = vmatprep.subr.mxu0 0.0
  %260 = vmatpush1.msra.mxu0 0.0
  %261 = vmatprep.subr.mxu0 0.0
  %262 = vmatpush1.msra.mxu0 0.0
  %263 = vmatprep.subr.mxu0 0.0
  %264 = vmatpush1.msra.mxu0 0.0
  %265 = vmatprep.subr.mxu0 0.0
  %266 = vmatpush1.msra.mxu0 0.0
  %267 = vmatprep.subr.mxu0 0.0
  %268 = vmatpush1.msra.mxu0 0.0
  %269 = vmatprep.subr.mxu0 0.0
  %270 = vmatpush1.msra.mxu0 0.0
  %271 = vmatprep.subr.mxu0 0.0
  %272 = vmatpush1.msra.mxu0 0.0
  %273 = vmatprep.mubr.f32.mxu0 0.0
  %274 = vmatmul.mubr.f32.gmra.mrb[0].mxu0 %v198
  %v275 = vpop.f32.mrb[0].mxu0
  %v276 = vadd.f32 %v179, %v275
  %v277 = vpop.f32.mrb[0].mxu0
  %278 = vmatprep.mubr.f32.mxu0 0.0
  %279 = vmatmul.mubr.f32.gmra.mrb[0].mxu0 %v201
  %v280 = vpop.f32.mrb[0].mxu0
  %v281 = vadd.f32 %v184, %v280
  %v282 = vpop.f32.mrb[0].mxu0
  %283 = vmatprep.mubr.f32.mxu0 0.0
  %284 = vmatmul.mubr.f32.gmra.mrb[0].mxu0 %v204
  %v285 = vpop.f32.mrb[0].mxu0
  %v286 = vadd.f32 %v189, %v285
  %v287 = vpop.f32.mrb[0].mxu0
  %288 = vmatprep.mubr.f32.mxu0 0.0
  %289 = vmatmul.mubr.f32.gmra.mrb[0].mxu0 %v207
  %v290 = vpop.f32.mrb[0].mxu0
  %v291 = vadd.f32 %v194, %v290
  %v292 = vpop.f32.mrb[0].mxu0
  %293 = vdwg.mxu0
  %v294 = vmax.f32 %v276, 0.0
  %v295 = vmax.f32 %v281, 0.0
  %v296 = vmax.f32 %v286, 0.0
  %v297 = vmax.f32 %v291, 0.0
  %v298 = vld [vmem:[%s5] sm:$0xff]
  %v299 = vld [vmem:[%s5 + $0x8] sm:$0xff]
  %v300 = vld [vmem:[%s6] sm:$0xff]
  %v301 = vld [vmem:[%s6 + $0x8] sm:$0xff]
  %303 = vset.pattern.permute.xlu0 0
  %304 = vperm.xlu0 %303, %v300
  %v305 = vpop.permute.xlu0 %304
  %308 = vset.pattern.permute.xlu0 0
  %309 = vperm.xlu0 %308, %v301
  %v310 = vpop.permute.xlu0 %309
  %v313 = vsel %vm196, %v298, 0
  %v316 = vsel %vm196, %v299, 0
  %318 = vmatprep.subr.mxu0 0.0
  %319 = vmatpush1.msra.mxu0 %v294
  %320 = vmatprep.subr.mxu0 0.0
  %321 = vmatpush1.msra.mxu0 %v295
  %322 = vmatprep.subr.mxu0 0.0
  %323 = vmatpush1.msra.mxu0 %v296
  %324 = vmatprep.subr.mxu0 0.0
  %325 = vmatpush1.msra.mxu0 %v297
  %326 = vmatprep.subr.mxu0 0.0
  %327 = vmatpush1.msra.mxu0 0.0
  %328 = vmatprep.subr.mxu0 0.0
  %329 = vmatpush1.msra.mxu0 0.0
  %330 = vmatprep.subr.mxu0 0.0
  %331 = vmatpush1.msra.mxu0 0.0
  %332 = vmatprep.subr.mxu0 0.0
  %333 = vmatpush1.msra.mxu0 0.0
  %334 = vmatprep.subr.mxu0 0.0
  %335 = vmatpush1.msra.mxu0 0.0
  %336 = vmatprep.subr.mxu0 0.0
  %337 = vmatpush1.msra.mxu0 0.0
  %338 = vmatprep.subr.mxu0 0.0
  %339 = vmatpush1.msra.mxu0 0.0
  %340 = vmatprep.subr.mxu0 0.0
  %341 = vmatpush1.msra.mxu0 0.0
  %342 = vmatprep.subr.mxu0 0.0
  %343 = vmatpush1.msra.mxu0 0.0
  %344 = vmatprep.subr.mxu0 0.0
  %345 = vmatpush1.msra.mxu0 0.0
  %346 = vmatprep.subr.mxu0 0.0
  %347 = vmatpush1.msra.mxu0 0.0
  %348 = vmatprep.subr.mxu0 0.0
  %349 = vmatpush1.msra.mxu0 0.0
  %350 = vmatprep.subr.mxu0 0.0
  %351 = vmatpush1.msra.mxu0 0.0
  %352 = vmatprep.subr.mxu0 0.0
  %353 = vmatpush1.msra.mxu0 0.0
  %354 = vmatprep.subr.mxu0 0.0
  %355 = vmatpush1.msra.mxu0 0.0
  %356 = vmatprep.subr.mxu0 0.0
  %357 = vmatpush1.msra.mxu0 0.0
  %358 = vmatprep.subr.mxu0 0.0
  %359 = vmatpush1.msra.mxu0 0.0
  %360 = vmatprep.subr.mxu0 0.0
  %361 = vmatpush1.msra.mxu0 0.0
  %362 = vmatprep.subr.mxu0 0.0
  %363 = vmatpush1.msra.mxu0 0.0
  %364 = vmatprep.subr.mxu0 0.0
  %365 = vmatpush1.msra.mxu0 0.0
  %366 = vmatprep.subr.mxu0 0.0
  %367 = vmatpush1.msra.mxu0 0.0
  %368 = vmatprep.subr.mxu0 0.0
  %369 = vmatpush1.msra.mxu0 0.0
  %370 = vmatprep.subr.mxu0 0.0
  %371 = vmatpush1.msra.mxu0 0.0
  %372 = vmatprep.subr.mxu0 0.0
  %373 = vmatpush1.msra.mxu0 0.0
  %374 = vmatprep.subr.mxu0 0.0
  %375 = vmatpush1.msra.mxu0 0.0
  %376 = vmatprep.subr.mxu0 0.0
  %377 = vmatpush1.msra.mxu0 0.0
  %378 = vmatprep.subr.mxu0 0.0
  %379 = vmatpush1.msra.mxu0 0.0
  %380 = vmatprep.subr.mxu0 0.0
  %381 = vmatpush1.msra.mxu0 0.0
  %382 = vmatprep.mubr.f32.mxu0 0.0
  %383 = vmatmul.mubr.f32.gmra.mrb[0].mxu0 %v313
  %v384 = vpop.f32.mrb[0].mxu0
  %v385 = vadd.f32 %v305, %v384
  %v386 = vpop.f32.mrb[0].mxu0
  %387 = vmatprep.mubr.f32.mxu0 0.0
  %388 = vmatmul.mubr.f32.gmra.mrb[0].mxu0 %v316
  %v389 = vpop.f32.mrb[0].mxu0
  %v390 = vadd.f32 %v310, %v389
  %v391 = vpop.f32.mrb[0].mxu0
  %392 = vdwg.mxu0
  %v393 = vmax.f32 %v385, 0.0
  %v394 = vmax.f32 %v390, 0.0
  %v395 = vld [vmem:[%s7] sm:$0x3]
  %v396 = vld [vmem:[%s8] sm:$0x3]
  %398 = vset.pattern.permute.xlu0 0
  %399 = vperm.xlu0 %398, %v396
  %v400 = vpop.permute.xlu0 %399
  %vm402 = vcmask 130048
  %v404 = vsel %vm402, %v395, 0
  %406 = vmatprep.subr.mxu0 0.0
  %407 = vmatpush1.msra.mxu0 %v393
  %408 = vmatprep.subr.mxu0 0.0
  %409 = vmatpush1.msra.mxu0 %v394
  %410 = vmatprep.subr.mxu0 0.0
  %411 = vmatpush1.msra.mxu0 0.0
  %412 = vmatprep.subr.mxu0 0.0
  %413 = vmatpush1.msra.mxu0 0.0
  %414 = vmatprep.subr.mxu0 0.0
  %415 = vmatpush1.msra.mxu0 0.0
  %416 = vmatprep.subr.mxu0 0.0
  %417 = vmatpush1.msra.mxu0 0.0
  %418 = vmatprep.subr.mxu0 0.0
  %419 = vmatpush1.msra.mxu0 0.0
  %420 = vmatprep.subr.mxu0 0.0
  %421 = vmatpush1.msra.mxu0 0.0
  %422 = vmatprep.subr.mxu0 0.0
  %423 = vmatpush1.msra.mxu0 0.0
  %424 = vmatprep.subr.mxu0 0.0
  %425 = vmatpush1.msra.mxu0 0.0
  %426 = vmatprep.subr.mxu0 0.0
  %427 = vmatpush1.msra.mxu0 0.0
  %428 = vmatprep.subr.mxu0 0.0
  %429 = vmatpush1.msra.mxu0 0.0
  %430 = vmatprep.subr.mxu0 0.0
  %431 = vmatpush1.msra.mxu0 0.0
  %432 = vmatprep.subr.mxu0 0.0
  %433 = vmatpush1.msra.mxu0 0.0
  %434 = vmatprep.subr.mxu0 0.0
  %435 = vmatpush1.msra.mxu0 0.0
  %436 = vmatprep.subr.mxu0 0.0
  %437 = vmatpush1.msra.mxu0 0.0
  %438 = vmatprep.subr.mxu0 0.0
  %439 = vmatpush1.msra.mxu0 0.0
  %440 = vmatprep.subr.mxu0 0.0
  %441 = vmatpush1.msra.mxu0 0.0
  %442 = vmatprep.subr.mxu0 0.0
  %443 = vmatpush1.msra.mxu0 0.0
  %444 = vmatprep.subr.mxu0 0.0
  %445 = vmatpush1.msra.mxu0 0.0
  %446 = vmatprep.subr.mxu0 0.0
  %447 = vmatpush1.msra.mxu0 0.0
  %448 = vmatprep.subr.mxu0 0.0
  %449 = vmatpush1.msra.mxu0 0.0
  %450 = vmatprep.subr.mxu0 0.0
  %451 = vmatpush1.msra.mxu0 0.0
  %452 = vmatprep.subr.mxu0 0.0
  %453 = vmatpush1.msra.mxu0 0.0
  %454 = vmatprep.subr.mxu0 0.0
  %455 = vmatpush1.msra.mxu0 0.0
  %456 = vmatprep.subr.mxu0 0.0
  %457 = vmatpush1.msra.mxu0 0.0
  %458 = vmatprep.subr.mxu0 0.0
  %459 = vmatpush1.msra.mxu0 0.0
  %460 = vmatprep.subr.mxu0 0.0
  %461 = vmatpush1.msra.mxu0 0.0
  %462 = vmatprep.subr.mxu0 0.0
  %463 = vmatpush1.msra.mxu0 0.0
  %464 = vmatprep.subr.mxu0 0.0
  %465 = vmatpush1.msra.mxu0 0.0
  %466 = vmatprep.subr.mxu0 0.0
  %467 = vmatpush1.msra.mxu0 0.0
  %468 = vmatprep.subr.mxu0 0.0
  %469 = vmatpush1.msra.mxu0 0.0
  %470 = vmatprep.mubr.f32.mxu0 0.0
  %471 = vmatmul.mubr.f32.gmra.mrb[0].mxu0 %v404
  %v472 = vpop.f32.mrb[0].mxu0
  %v473 = vadd.f32 %v400, %v472
  %v474 = vpop.f32.mrb[0].mxu0
  %475 = vdwg.mxu0
  %476 = vst [vmem:[%s9] sm:$0x3] %v473
  // Predicated region
  $region38: #{neuro_fuzzy_forward.1} parent=0 // pred_check
    _
  $region39: #{neuro_fuzzy_forward.1} parent=0 // pred_check_branch
    %478 = sbr.rel (0) target = $region41
  $region40: #{neuro_fuzzy_forward.1} parent=0 // pred_region
    _
  $region41: #{neuro_fuzzy_forward.1} parent=0 // pred_fallthru
    _
  // Predicated region
  $region42: #{neuro_fuzzy_forward.1} parent=0 // pred_check
    _
  $region43: #{neuro_fuzzy_forward.1} parent=0 // pred_check_branch
    %480 = sbr.rel (0) target = $region45
  $region44: #{neuro_fuzzy_forward.1} parent=0 // pred_region
    _
  $region45: #{neuro_fuzzy_forward.1} parent=0 // pred_fallthru
    _

</llo_original>
